<compile_context>
chip_gen: v5e
topology: v5e:2x2
jax: 0.10.0
libtpu: 0.0.40
codegen_flags: <defaults>
</compile_context>

<pallas_src>
import jax
import jax.numpy as jnp
from jax.experimental import pallas as pl
from jax.experimental.pallas import tpu as pltpu

# ---- module-level constants that GLOVENet's forward references as globals ----
MAX_TASKS_TRAIN = 16          # number of classes fed into `easy` Linear
GLOVE_DIM = 22                # glove sensor dimension (unused on non-prediction path)
VOTE = False
PREDICTION_WINDOW_SIZE = 1
D_E = 32                      # embedding size d_e


def easy_onehot_kernel(labels_ref, w_t_ref, b_ref, out_ref):
    """out = one_hot(labels, C) @ W^T + bias   (single vectorized block).

    labels_ref: (N, 1)  int32 VMEM   -- flattened labels as a column vector
    w_t_ref:    (C, d_e) f32  VMEM   -- easy.weight transposed (prepped at init)
    b_ref:      (1, d_e) f32  VMEM   -- easy.bias
    out_ref:    (N, d_e) f32  VMEM
    """
    labels = labels_ref[...]                                     # (N, 1) int32
    w = w_t_ref[...]                                             # (C, d_e) f32
    bias = b_ref[...]                                            # (1, d_e) f32

    n = out_ref.shape[0]
    c = w.shape[0]

    # One-shot one-hot mask: (N, C).  Exact in f32; out-of-range labels produce
    # an all-zero row (matches jax.nn.one_hot; PyTorch would raise instead).
    class_ids = jax.lax.broadcasted_iota(jnp.int32, (n, c), 1)   # (N, C)
    onehot = (class_ids == labels).astype(jnp.float32)           # (N, C)

    # Single 16x16x32 MXU matmul in f32 (no bf16 downcast), one bias broadcast,
    # one full-block store.
    out = jnp.dot(onehot, w, preferred_element_type=jnp.float32) + bias
    out_ref[...] = out


def prepare_easy_params(easy_w, easy_b):
    """One-time parameter prep (init time, NOT the per-call hot path).

    easy_w: (d_e, C) float32  -- nn.Linear(MAX_TASKS_TRAIN, d_e).weight
    easy_b: (d_e,)   float32  -- nn.Linear(...).bias
    Returns (w_t, b2) with w_t: (C, d_e), b2: (1, d_e).
    """
    w_t = jnp.asarray(easy_w, jnp.float32).T
    b2 = jnp.asarray(easy_b, jnp.float32).reshape(1, -1)
    return w_t, b2


def glove_net_forward(glove, labels, w_t, b2):
    """JAX wrapper matching GLOVENet.forward (prediction=False, training=True).

    glove:  (B, W, GLOVE_DIM) -- unused on this path (shape only)
    labels: (B, W) int32
    w_t:    (C, d_e) f32 from prepare_easy_params
    b2:     (1, d_e) f32 from prepare_easy_params
    """
    b = glove.shape[0]
    d_e = w_t.shape[1]
    labels_col = labels.reshape(-1, 1).astype(jnp.int32)         # (N, 1) int32
    n = labels_col.shape[0]

    out = pl.pallas_call(
        easy_onehot_kernel,
        out_shape=jax.ShapeDtypeStruct((n, d_e), jnp.float32),
        in_specs=[
            pl.BlockSpec(memory_space=pltpu.MemorySpace.VMEM),   # labels (N,1)
            pl.BlockSpec(memory_space=pltpu.MemorySpace.VMEM),   # weight^T, resident
            pl.BlockSpec(memory_space=pltpu.MemorySpace.VMEM),   # bias, resident
        ],
        out_specs=pl.BlockSpec(memory_space=pltpu.MemorySpace.VMEM),
    )(labels_col, w_t, b2)

    # out.reshape((shape[0], -1, self.bits)) in the PyTorch code
    return out.reshape(b, -1, d_e)


if __name__ == "__main__":
    key = jax.random.PRNGKey(0)
    k_glove, k_labels, k_w, k_b = jax.random.split(key, 4)

    B, W = 2, 8                                  # batch, window length
    glove = jax.random.normal(k_glove, (B, W, GLOVE_DIM), dtype=jnp.float32)
    labels = jax.random.randint(k_labels, (B, W), 0, MAX_TASKS_TRAIN,
                                dtype=jnp.int32)

    # Deterministic init of nn.Linear(MAX_TASKS_TRAIN, d_e) parameters
    # (PyTorch-style uniform(-1/sqrt(fan_in), 1/sqrt(fan_in))).
    bound = 1.0 / (MAX_TASKS_TRAIN ** 0.5)
    easy_w = jax.random.uniform(k_w, (D_E, MAX_TASKS_TRAIN),
                                minval=-bound, maxval=bound, dtype=jnp.float32)
    easy_b = jax.random.uniform(k_b, (D_E,),
                                minval=-bound, maxval=bound, dtype=jnp.float32)

    # Init-time prep (transpose / reshape happen once, outside the hot path).
    w_t, b2 = prepare_easy_params(easy_w, easy_b)

    out = glove_net_forward(glove, labels, w_t, b2)
    out = jax.block_until_ready(out)

    # Pure-JAX reference of the same forward path.
    hot_ref = jax.nn.one_hot(labels.reshape(-1), MAX_TASKS_TRAIN,
                             dtype=jnp.float32)
    ref = (hot_ref @ easy_w.T + easy_b).reshape(B, -1, D_E)

    assert out.shape == (B, W, D_E), out.shape
    assert jnp.allclose(out, ref, atol=1e-5, rtol=1e-5), "mismatch vs reference"
    print("KERNEL_OK")
</pallas_src>

<mosaic_0001>
module attributes {stable_mosaic.version = 11 : i64} {
  func.func @easy_onehot_kernel(%arg0: memref<16x1xi32, #tpu.memory_space<vmem>>, %arg1: memref<16x32xf32, #tpu.memory_space<vmem>>, %arg2: memref<1x32xf32, #tpu.memory_space<vmem>>, %arg3: memref<16x32xf32, #tpu.memory_space<vmem>>) attributes {dimension_semantics = [], scalar_prefetch = 0 : i64, scratch_operands = 0 : i64, tpu.core_type = #tpu.core_type<tc>} {
    %c0 = arith.constant 0 : index
    %c0_0 = arith.constant 0 : index
    %0 = vector.load %arg0[%c0, %c0_0] : memref<16x1xi32, #tpu.memory_space<vmem>>, vector<16x1xi32>
    %c0_1 = arith.constant 0 : index
    %c0_2 = arith.constant 0 : index
    %1 = vector.load %arg1[%c0_1, %c0_2] : memref<16x32xf32, #tpu.memory_space<vmem>>, vector<16x32xf32>
    %c0_3 = arith.constant 0 : index
    %c0_4 = arith.constant 0 : index
    %2 = vector.load %arg2[%c0_3, %c0_4] : memref<1x32xf32, #tpu.memory_space<vmem>>, vector<1x32xf32>
    %3 = tpu.iota {dimensions = array<i32: 1>} : vector<16x16xi32>
    %4 = vector.broadcast %0 : vector<16x1xi32> to vector<16x16xi32>
    %5 = arith.cmpi eq, %3, %4 : vector<16x16xi32>
    %6 = arith.extui %5 : vector<16x16xi1> to vector<16x16xi32>
    %7 = arith.sitofp %6 : vector<16x16xi32> to vector<16x16xf32>
    %cst = arith.constant dense<0.000000e+00> : vector<16x32xf32>
    %8 = tpu.matmul %7, %1, %cst {dimension_numbers = #tpu.dot_dimension_numbers<[1], [0], [0], [1], [0, 0, 1, 1], [], []>} : vector<16x16xf32>, vector<16x32xf32>, vector<16x32xf32> -> vector<16x32xf32>
    %9 = vector.broadcast %2 : vector<1x32xf32> to vector<16x32xf32>
    %10 = arith.addf %8, %9 : vector<16x32xf32>
    %c0_5 = arith.constant 0 : index
    %c0_6 = arith.constant 0 : index
    %11 = vector.load %arg3[%c0_5, %c0_6] : memref<16x32xf32, #tpu.memory_space<vmem>>, vector<16x32xf32>
    tpu.vector_store %arg3[%c0_5, %c0_6], %10 {strides = array<i32>} : memref<16x32xf32, #tpu.memory_space<vmem>>, vector<16x32xf32>,
    return
  }
}

</mosaic_0001>

<llo_original>
// kernel: tpu_custom_call.1
$region0: #{tpu_custom_call.1}
  #allocation0 [shape = 'u32[]', space=smem, size = 0x4, offset = 0x4, fixed_abs, tag = 'smem constant byte address 0x4 - core index']
  #allocation1 [shape = 'u32[72,128]{1,0:T(1,128)}', space=vmem, size = 0x9000, scoped, tag = 'internal scratch']
  %s0 = inlined_call_operand.vmem [shape: s32[16,1], index: 0, kind: input, shape index: {}]
  %s1 = inlined_call_operand.vmem [shape: f32[16,32], index: 1, kind: input, shape index: {}]
  %s2 = inlined_call_operand.vmem [shape: f32[1,32], index: 2, kind: input, shape index: {}]
  %s3 = inlined_call_operand.hbm [shape: f32[16,32], index: 3, kind: output, shape index: {}]
  %s4 = sld [smem:[#allocation0]]
  $region22: #{tpu_custom_call.1} parent=0
    _
  %s6 = ssub.s32 1, %s4
  %s7 = scalar_select 0, %s6, %s4
  $region1: #{tpu_custom_call.1} parent=0
    #allocation2 [shape = 'u8[8192]{0}', space=vmem, size = 0x2000, scoped, tag = 'output window, operand 0, single buffered']
    #allocation3 [shape = 's32[1]{0}', space=sflag, size = 0x4, scoped, tag = 'scoped memory for tpu_custom_call.1']
    %8 = vsyncpa [#allocation3], 0
    // Predicated region
    $region2: #{tpu_custom_call.1} parent=1 // pred_check
      _
    $region3: #{tpu_custom_call.1} parent=1 // pred_check_branch
      %10 = sbr.rel (0) target = $region5
    $region4: #{tpu_custom_call.1} parent=1 // pred_region
      _
    $region5: #{tpu_custom_call.1} parent=1 // pred_fallthru
      _
    // Predicated region
    $region6: #{tpu_custom_call.1} parent=1 // pred_check
      _
    $region7: #{tpu_custom_call.1} parent=1 // pred_check_branch
      %12 = sbr.rel (0) target = $region9
    $region8: #{tpu_custom_call.1} parent=1 // pred_region
      _
    $region9: #{tpu_custom_call.1} parent=1 // pred_fallthru
      _
    // Predicated region
    $region10: #{tpu_custom_call.1} parent=1 // pred_check
      _
    $region11: #{tpu_custom_call.1} parent=1 // pred_check_branch
      %14 = sbr.rel (0) target = $region13
    $region12: #{tpu_custom_call.1} parent=1 // pred_region
      _
    $region13: #{tpu_custom_call.1} parent=1 // pred_fallthru
      _
    %v15 = vld [vmem:[%s0] sm:$0xff]
    %v16 = vld [vmem:[%s0 + $0x8] sm:$0xff]
    %v17 = vld [vmem:[%s1] sm:$0xff]
    %v18 = vld [vmem:[%s1 + $0x8] sm:$0xff]
    %v19 = vld [vmem:[%s2] sm:$0x1]
    %v20 = vlaneseq
    %v21 = vand.u32 %v20, 127
    %22 = vset.pattern.permute.xlu0 0
    %23 = vperm.xlu0 %22, %v15
    %v24 = vpop.permute.xlu0 %23
    %25 = vset.pattern.permute.xlu0 0
    %26 = vperm.xlu0 %25, %v16
    %v27 = vpop.permute.xlu0 %26
    %vm28 = vcmp.eq.s32.totalorder %v21, %v24
    %vm29 = vcmp.eq.s32.totalorder %v21, %v27
    %v30 = vsel %vm28, 1, 0
    %v31 = vsel %vm29, 1, 0
    %v32 = vcvt.s32.f32 %v30
    %v33 = vcvt.s32.f32 %v31
    %v35 = vperm.slane %v19, 0
    %vm37 = vcmask 130048
    %v39 = vsel %vm37, %v32, 0
    %v42 = vsel %vm37, %v33, 0
    %44 = vmatpush.msra.mxu0 0.0
    %45 = vmatpush.msra.mxu0 0.0
    %46 = vmatpush.msra.mxu0 0.0
    %47 = vmatpush.msra.mxu0 0.0
    %48 = vmatpush.msra.mxu0 0.0
    %49 = vmatpush.msra.mxu0 0.0
    %50 = vmatpush.msra.mxu0 0.0
    %51 = vmatpush.msra.mxu0 0.0
    %52 = vmatpush.msra.mxu0 0.0
    %53 = vmatpush.msra.mxu0 0.0
    %54 = vmatpush.msra.mxu0 0.0
    %55 = vmatpush.msra.mxu0 0.0
    %56 = vmatpush.msra.mxu0 0.0
    %57 = vmatpush.msra.mxu0 0.0
    %58 = vmatpush.msra.mxu0 %v18
    %59 = vmatpush.msra.mxu0 %v17
    %60 = vmatmul.f32.gmra.mxu0 %v39
    %v61 = vpop.f32.mrf.mxu0
    %v62 = vadd.f32 %v35, %v61
    %63 = vmatmul.f32.gmra.mxu0 %v42
    %v64 = vpop.f32.mrf.mxu0
    %v65 = vadd.f32 %v35, %v64
    %66 = vdwg.mxu0
    %vm67 = vcmask 261120
    %68 = vst.msk [vmem:[#allocation2] sm:$0xff] %vm67, %v62
    %69 = vst.msk [vmem:[#allocation2 + $0x8] sm:$0xff] %vm67, %v65
    // Predicated region
    $region14: #{tpu_custom_call.1} parent=1 // pred_check
      _
    $region15: #{tpu_custom_call.1} parent=1 // pred_check_branch
      %71 = sbr.rel (0) target = $region17
    $region16: #{tpu_custom_call.1} parent=1 // pred_region
      %73 = vsyncadd [#allocation3], 0
      %s74 = sshll.u32 [#allocation2], 4
      %s75 = int_to_ptr.vmem [resolvable:$true] %s74
      %s76 = sshll.u32 %s3, 4
      %s77 = int_to_ptr.hbm [resolvable:$true] %s76
      %82 = dma.vmem_to_hbm [thread:$0]  %s75, 256, %s77, [#allocation3], 128, 128, 8
    $region17: #{tpu_custom_call.1} parent=1 // pred_fallthru
      _
    // Predicated region
    $region18: #{tpu_custom_call.1} parent=1 // pred_check
      _
    $region19: #{tpu_custom_call.1} parent=1 // pred_check_branch
      %84 = sbr.rel (0) target = $region21
    $region20: #{tpu_custom_call.1} parent=1 // pred_region
      %86 = dma.done [#allocation3], 256
    $region21: #{tpu_custom_call.1} parent=1 // pred_fallthru
      _
    %87 = vsyncpa [#allocation3], 1

</llo_original>
